<compile_context>
chip_gen: v5e
topology: v5e:2x2
jax: 0.10.0
libtpu: 0.0.40
codegen_flags: <defaults>
</compile_context>

<pallas_src>
import functools

import jax
import jax.numpy as jnp
from jax import lax
from jax.experimental import pallas as pl
from jax.experimental.pallas import tpu as pltpu

EPS = 1e-5
LANE = 128
F32 = jnp.float32
BF16 = jnp.bfloat16


def _round_up(x, m):
    return (x + m - 1) // m * m


def _vmem_limit(per_step_bytes):
    """Generation-aware VMEM limit: 2x (double-buffered) per-step footprint
    plus headroom, clamped to ~3/4 of the chip's physical VMEM."""
    try:
        cap = pltpu.get_tpu_info().vmem_capacity_bytes
    except Exception:  # noqa: BLE001 - fall back to the smallest gen (v7x)
        cap = 64 << 20
    need = 2 * per_step_bytes + (8 << 20)
    return int(min(max(need, 32 << 20), (3 * cap) // 4))


def _interior_mask(rows, cols, wp, h, w):
    """(rows, cols) bool mask, True at real image pixels of the padded grid.
    Built from iota -> pure VPU compares, no VMEM input, no lane broadcast."""
    r = lax.broadcasted_iota(jnp.int32, (rows, cols), 0)
    y = r // wp
    x = r - y * wp
    return (y >= 1) & (y <= h) & (x >= 1) & (x <= w)


# --------------------------- kernels ----------------------------------------
def _conv1_kernel(x_ref, w1_ref, h1_ref, s1_ref, s2_ref):
    # conv1 (1x1) as a single bf16 MXU matmul with f32 accumulation.
    h = jnp.dot(x_ref[0], w1_ref[...], preferred_element_type=jnp.float32)
    # Halo / padding rows of x are exactly zero -> those rows of h are zero,
    # so unmasked sums equal sums over the real N*H*W pixels.
    s1_ref[...] = jnp.sum(h, axis=0, keepdims=True)[None]
    s2_ref[...] = jnp.sum(h * h, axis=0, keepdims=True)[None]
    h1_ref[0] = h.astype(BF16)


def _conv2_kernel(h1_ref, sc_ref, sh_ref, w2_ref, h2_ref, s1_ref, s2_ref,
                  pad_ref, *, hh, ww, wp, lead):
    R, Pp = h1_ref.shape[1], h1_ref.shape[2]
    interior = _interior_mask(R, Pp, wp, hh, ww)

    # bn1 (folded scale/shift) + relu, then re-zero the halo rows so conv2
    # sees proper zero padding.
    a = h1_ref[0].astype(jnp.float32) * sc_ref[...] + sh_ref[...]
    a = jnp.where(interior, jnp.maximum(a, 0.0), 0.0)

    # conv2 (3x3, pad=1) as 9 row-shifted 2-D matmuls over an f32 scratch
    # slab; only the small lead/tail bands are zero-filled.
    pad_ref[0:lead, :] = jnp.zeros((lead, Pp), jnp.float32)
    pad_ref[lead + R:lead + R + lead, :] = jnp.zeros((lead, Pp), jnp.float32)
    pad_ref[lead:lead + R, :] = a

    def tap(t):
        dy, dx = t // 3, t % 3
        start = lead + (dy - 1) * wp + (dx - 1)          # static offset
        return jnp.dot(pad_ref[start:start + R, :].astype(jnp.bfloat16),
                       w2_ref[t], preferred_element_type=jnp.float32)

    # Two accumulation chains, each seeded by its first tap.
    acc_a = tap(0)
    acc_b = tap(1)
    for t in range(2, 9, 2):
        acc_a = acc_a + tap(t)
    for t in range(3, 9, 2):
        acc_b = acc_b + tap(t)
    acc = acc_a + acc_b

    # bn2 partial stats: exclude the garbage halo rows.
    am = jnp.where(interior, acc, 0.0)
    s1_ref[...] = jnp.sum(am, axis=0, keepdims=True)[None]
    s2_ref[...] = jnp.sum(am * acc, axis=0, keepdims=True)[None]
    h2_ref[0] = acc.astype(BF16)


def _conv3_kernel(h2_ref, sc_ref, sh_ref, w3_ref, h3_ref, s1_ref, s2_ref,
                  *, hh, ww, wp):
    R = h2_ref.shape[1]
    Cp = w3_ref.shape[1]
    # bn2 (folded) + relu.  conv3 is 1x1 -> no spatial mixing, so the halo
    # garbage never contaminates interior rows; it is only excluded from the
    # bn3 statistics below (and sliced away in the wrapper).
    a = jnp.maximum(h2_ref[0].astype(jnp.float32) * sc_ref[...] + sh_ref[...],
                    0.0)
    h = jnp.dot(a.astype(jnp.bfloat16), w3_ref[...],
                preferred_element_type=jnp.float32)
    interior = _interior_mask(R, Cp, wp, hh, ww)
    hm = jnp.where(interior, h, 0.0)
    s1_ref[...] = jnp.sum(hm, axis=0, keepdims=True)[None]
    s2_ref[...] = jnp.sum(hm * h, axis=0, keepdims=True)[None]
    h3_ref[0] = h


def _residual_kernel(h3_ref, x_ref, sc_ref, sh_ref, o_ref):
    # bn3 (folded) + identity residual + relu.
    h = h3_ref[0] * sc_ref[...] + sh_ref[...]
    o_ref[0] = jnp.maximum(h + x_ref[0].astype(jnp.float32), 0.0)


# --------------------------- wrapper -----------------------------------------
def _fold_bn(s1, s2, gamma, beta, count):
    """Training-mode BN folded into per-channel scale/shift (tiny (1,C) math).
    Single-pass biased variance; see TODO(synk) at the top of the file."""
    mean = s1 / count
    var = jnp.maximum(s2 / count - mean * mean, 0.0)
    scale = gamma * lax.rsqrt(var + EPS)
    shift = beta - mean * scale
    return scale, shift


def bottleneck_pallas(x_nchw, params):
    """x_nchw: (N, Cin, H, W) float32; returns (N, Cin, H, W) float32."""
    N, Cin, H, W = x_nchw.shape
    P = params["w1"].shape[1]
    assert Cin == 4 * P, "identity residual requires inplanes == planes * 4"

    Cp = _round_up(Cin, LANE)            # lane-dense in/out channels
    Pp = _round_up(P, LANE)              # lane-dense mid channels
    Hp, Wp = H + 2, W + 2
    R = _round_up(Hp * Wp, 8)            # per-image padded-grid rows
    lead = _round_up(W + 3, 8)           # covers the max |tap shift| = W + 3
    nhw = float(N * H * W)

    # ---- activations: one padded-grid bf16 slab per image ------------------
    # TODO(synk): in a full network keep activations NHWC / halo+channel
    # padded across layers so these boundary layout ops leave the hot path.
    x_nhwc = jnp.transpose(x_nchw, (0, 2, 3, 1)).astype(BF16)
    x_slab = (jnp.zeros((N, Hp, Wp, Cp), BF16)
              .at[:, 1:H + 1, 1:W + 1, :Cin].set(x_nhwc)
              .reshape(N, Hp * Wp, Cp))
    x_slab = jnp.pad(x_slab, ((0, 0), (0, R - Hp * Wp), (0, 0)))

    # ---- weights / BN params: bf16 / f32, zero-padded to lane multiples ----
    w1 = jnp.zeros((Cp, Pp), BF16).at[:Cin, :P].set(params["w1"].astype(BF16))
    w2 = (jnp.zeros((3, 3, Pp, Pp), BF16)
          .at[:, :, :P, :P].set(params["w2"].astype(BF16))
          .reshape(9, Pp, Pp))
    w3 = jnp.zeros((Pp, Cp), BF16).at[:P, :Cin].set(params["w3"].astype(BF16))

    def padp(v, n):
        return jnp.zeros((1, n), F32).at[:, :v.shape[1]].set(v)

    g1, b1 = padp(params["g1"], Pp), padp(params["b1"], Pp)
    g2, b2 = padp(params["g2"], Pp), padp(params["b2"], Pp)
    g3, b3 = padp(params["g3"], Cp), padp(params["b3"], Cp)

    row_spec = lambda c: pl.BlockSpec((1, R, c), lambda n: (n, 0, 0))   # noqa: E731
    stat_spec = lambda c: pl.BlockSpec((1, 1, c), lambda n: (n, 0, 0))  # noqa: E731
    vec_spec = lambda c: pl.BlockSpec((1, c), lambda n: (0, 0))         # noqa: E731
    par = ("parallel",)

    # ---- pass 1: conv1 (1x1) + bn1 partial stats ----------------------------
    h1, a1, q1 = pl.pallas_call(
        _conv1_kernel,
        grid=(N,),
        in_specs=(row_spec(Cp),
                  pl.BlockSpec((Cp, Pp), lambda n: (0, 0))),
        out_specs=(row_spec(Pp), stat_spec(Pp), stat_spec(Pp)),
        out_shape=(jax.ShapeDtypeStruct((N, R, Pp), BF16),
                   jax.ShapeDtypeStruct((N, 1, Pp), F32),
                   jax.ShapeDtypeStruct((N, 1, Pp), F32)),
        compiler_params=pltpu.CompilerParams(
            dimension_semantics=par,
            vmem_limit_bytes=_vmem_limit(
                R * Cp * 2 + R * Pp * 2 + Cp * Pp * 2)),
    )(x_slab, w1)
    sc1, sh1 = _fold_bn(jnp.sum(a1, axis=0), jnp.sum(q1, axis=0), g1, b1, nhw)

    # ---- pass 2: bn1 + relu + conv2 (3x3) + bn2 partial stats ---------------
    k2 = functools.partial(_conv2_kernel, hh=H, ww=W, wp=Wp, lead=lead)
    h2, a2, q2 = pl.pallas_call(
        k2,
        grid=(N,),
        in_specs=(row_spec(Pp), vec_spec(Pp), vec_spec(Pp),
                  pl.BlockSpec((9, Pp, Pp), lambda n: (0, 0, 0))),
        out_specs=(row_spec(Pp), stat_spec(Pp), stat_spec(Pp)),
        out_shape=(jax.ShapeDtypeStruct((N, R, Pp), BF16),
                   jax.ShapeDtypeStruct((N, 1, Pp), F32),
                   jax.ShapeDtypeStruct((N, 1, Pp), F32)),
        scratch_shapes=[pltpu.VMEM((2 * lead + R, Pp), F32)],
        compiler_params=pltpu.CompilerParams(
            dimension_semantics=par,
            vmem_limit_bytes=_vmem_limit(
                2 * R * Pp * 2 + 9 * Pp * Pp * 2 + (2 * lead + R) * Pp * 4)),
    )(h1, sc1, sh1, w2)
    sc2, sh2 = _fold_bn(jnp.sum(a2, axis=0), jnp.sum(q2, axis=0), g2, b2, nhw)

    # ---- pass 3: bn2 + relu + conv3 (1x1) + bn3 partial stats ---------------
    k3 = functools.partial(_conv3_kernel, hh=H, ww=W, wp=Wp)
    h3, a3, q3 = pl.pallas_call(
        k3,
        grid=(N,),
        in_specs=(row_spec(Pp), vec_spec(Pp), vec_spec(Pp),
                  pl.BlockSpec((Pp, Cp), lambda n: (0, 0))),
        out_specs=(row_spec(Cp), stat_spec(Cp), stat_spec(Cp)),
        out_shape=(jax.ShapeDtypeStruct((N, R, Cp), F32),
                   jax.ShapeDtypeStruct((N, 1, Cp), F32),
                   jax.ShapeDtypeStruct((N, 1, Cp), F32)),
        compiler_params=pltpu.CompilerParams(
            dimension_semantics=par,
            vmem_limit_bytes=_vmem_limit(
                R * Pp * 2 + Pp * Cp * 2 + R * Cp * 4)),
    )(h2, sc2, sh2, w3)
    sc3, sh3 = _fold_bn(jnp.sum(a3, axis=0), jnp.sum(q3, axis=0), g3, b3, nhw)

    # ---- pass 4: bn3 + residual add + relu ----------------------------------
    out_slab = pl.pallas_call(
        _residual_kernel,
        grid=(N,),
        in_specs=(row_spec(Cp), row_spec(Cp), vec_spec(Cp), vec_spec(Cp)),
        out_specs=row_spec(Cp),
        out_shape=jax.ShapeDtypeStruct((N, R, Cp), F32),
        compiler_params=pltpu.CompilerParams(
            dimension_semantics=par,
            vmem_limit_bytes=_vmem_limit(2 * R * Cp * 4 + R * Cp * 2)),
    )(h3, x_slab, sc3, sh3)

    out = (out_slab[:, :Hp * Wp, :]
           .reshape(N, Hp, Wp, Cp)[:, 1:H + 1, 1:W + 1, :Cin])
    return jnp.transpose(out, (0, 3, 1, 2))   # back to NCHW


# ----------------------- pure-JAX reference (for checking) -------------------
def _bn_ref(x_nhwc, gamma, beta):
    mean = jnp.mean(x_nhwc, axis=(0, 1, 2), keepdims=True)
    var = jnp.mean((x_nhwc - mean) ** 2, axis=(0, 1, 2), keepdims=True)
    return (x_nhwc - mean) * lax.rsqrt(var + EPS) * gamma.reshape(1, 1, 1, -1) \
        + beta.reshape(1, 1, 1, -1)


def bottleneck_ref(x_nchw, params):
    x = jnp.transpose(x_nchw, (0, 2, 3, 1))
    h = jnp.einsum("nhwc,cp->nhwp", x, params["w1"])
    h = jax.nn.relu(_bn_ref(h, params["g1"][0], params["b1"][0]))
    h = lax.conv_general_dilated(
        h, params["w2"], window_strides=(1, 1), padding="SAME",
        dimension_numbers=("NHWC", "HWIO", "NHWC"))
    h = jax.nn.relu(_bn_ref(h, params["g2"][0], params["b2"][0]))
    h = jnp.einsum("nhwc,cp->nhwp", h, params["w3"])
    h = _bn_ref(h, params["g3"][0], params["b3"][0])
    out = jax.nn.relu(h + x)
    return jnp.transpose(out, (0, 3, 1, 2))


# -----------------------------------------------------------------------------
def make_params(key, inplanes, planes):
    ks = jax.random.split(key, 9)
    f = jnp.float32
    return {
        # conv1: PyTorch (planes, inplanes, 1, 1) -> (inplanes, planes)
        "w1": 0.1 * jax.random.normal(ks[0], (inplanes, planes), f),
        "g1": 1.0 + 0.1 * jax.random.normal(ks[1], (1, planes), f),
        "b1": 0.05 * jax.random.normal(ks[2], (1, planes), f),
        # conv2: PyTorch (planes, planes, 3, 3) -> HWIO (3, 3, planes, planes)
        "w2": 0.1 * jax.random.normal(ks[3], (3, 3, planes, planes), f),
        "g2": 1.0 + 0.1 * jax.random.normal(ks[4], (1, planes), f),
        "b2": 0.05 * jax.random.normal(ks[5], (1, planes), f),
        # conv3: PyTorch (4*planes, planes, 1, 1) -> (planes, 4*planes)
        "w3": 0.1 * jax.random.normal(ks[6], (planes, 4 * planes), f),
        "g3": 1.0 + 0.1 * jax.random.normal(ks[7], (1, 4 * planes), f),
        "b3": 0.05 * jax.random.normal(ks[8], (1, 4 * planes), f),
    }


if __name__ == "__main__":
    key = jax.random.PRNGKey(0)
    k_x, k_p = jax.random.split(key)

    # Note: at this demo width (P=8 -> Pp=128) the lane padding makes the MXU
    # do mostly zero work; tile/pipeline tuning should be done at production
    # widths (planes >= 64).  Kept small here per the harness requirements.
    N, planes, H, W = 2, 8, 16, 16
    inplanes = planes * 4  # 32: required so the identity residual adds cleanly

    x = jax.random.normal(k_x, (N, inplanes, H, W), jnp.float32)  # NCHW input
    params = make_params(k_p, inplanes, planes)

    out = jax.block_until_ready(bottleneck_pallas(x, params))
    ref = jax.block_until_ready(bottleneck_ref(x, params))

    assert out.shape == (N, inplanes, H, W)
    # bf16 MXU operands + bf16 activation slabs vs f32 XLA reference: check a
    # loose per-element bound plus a tight mean-error bound (real bugs give
    # O(1) errors everywhere).
    abs_err = jnp.abs(out - ref)
    max_err = float(jnp.max(abs_err))
    mean_err = float(jnp.mean(abs_err))
    assert jnp.allclose(out, ref, atol=1e-1, rtol=5e-2), (max_err, mean_err)
    assert mean_err < 1e-2, (max_err, mean_err)
    print("KERNEL_OK")
</pallas_src>

<mosaic_0001>
module attributes {stable_mosaic.version = 11 : i64} {
  func.func @_conv1_kernel(%arg0: i32, %arg1: memref<1x328x128xbf16, #tpu.memory_space<vmem>>, %arg2: memref<128x128xbf16, #tpu.memory_space<vmem>>, %arg3: memref<1x328x128xbf16, #tpu.memory_space<vmem>>, %arg4: memref<1x1x128xf32, #tpu.memory_space<vmem>>, %arg5: memref<1x1x128xf32, #tpu.memory_space<vmem>>) attributes {dimension_semantics = [#tpu.dimension_semantics<parallel>], iteration_bounds = array<i64: 2>, scalar_prefetch = 0 : i64, scratch_operands = 0 : i64, tpu.core_type = #tpu.core_type<tc>, window_params = [{transform_indices = @transform_0, window_bounds = array<i64: 1, 328, 128>}, {pipeline_mode = #tpu.pipeline_mode<synchronous>, transform_indices = @transform_1, window_bounds = array<i64: 128, 128>}, {transform_indices = @transform_2, window_bounds = array<i64: 1, 328, 128>}, {transform_indices = @transform_3, window_bounds = array<i64: 1, 1, 128>}, {transform_indices = @transform_4, window_bounds = array<i64: 1, 1, 128>}]} {
    %c0 = arith.constant 0 : index
    %c0_0 = arith.constant 0 : index
    %c0_1 = arith.constant 0 : index
    %0 = vector.load %arg1[%c0, %c0_0, %c0_1] : memref<1x328x128xbf16, #tpu.memory_space<vmem>>, vector<1x328x128xbf16>
    %1 = vector.shape_cast %0 : vector<1x328x128xbf16> to vector<328x128xbf16>
    %c0_2 = arith.constant 0 : index
    %c0_3 = arith.constant 0 : index
    %2 = vector.load %arg2[%c0_2, %c0_3] : memref<128x128xbf16, #tpu.memory_space<vmem>>, vector<128x128xbf16>
    %cst = arith.constant dense<0.000000e+00> : vector<328x128xf32>
    %3 = tpu.matmul %1, %2, %cst {dimension_numbers = #tpu.dot_dimension_numbers<[1], [0], [0], [1], [0, 0, 1, 1], [], []>} : vector<328x128xbf16>, vector<128x128xbf16>, vector<328x128xf32> -> vector<328x128xf32>
    %cst_4 = arith.constant dense<0.000000e+00> : vector<128xf32>
    %4 = vector.multi_reduction <add>, %3, %cst_4 [0] : vector<328x128xf32> to vector<128xf32>
    %5 = vector.shape_cast %4 : vector<128xf32> to vector<1x128xf32>
    %6 = vector.shape_cast %5 : vector<1x128xf32> to vector<1x1x128xf32>
    %c0_5 = arith.constant 0 : index
    %c0_6 = arith.constant 0 : index
    %c0_7 = arith.constant 0 : index
    %7 = vector.load %arg4[%c0_5, %c0_6, %c0_7] : memref<1x1x128xf32, #tpu.memory_space<vmem>>, vector<1x1x128xf32>
    tpu.vector_store %arg4[%c0_5, %c0_6, %c0_7], %6 {strides = array<i32>} : memref<1x1x128xf32, #tpu.memory_space<vmem>>, vector<1x1x128xf32>,
    %8 = arith.mulf %3, %3 : vector<328x128xf32>
    %cst_8 = arith.constant dense<0.000000e+00> : vector<128xf32>
    %9 = vector.multi_reduction <add>, %8, %cst_8 [0] : vector<328x128xf32> to vector<128xf32>
    %10 = vector.shape_cast %9 : vector<128xf32> to vector<1x128xf32>
    %11 = vector.shape_cast %10 : vector<1x128xf32> to vector<1x1x128xf32>
    %c0_9 = arith.constant 0 : index
    %c0_10 = arith.constant 0 : index
    %c0_11 = arith.constant 0 : index
    %12 = vector.load %arg5[%c0_9, %c0_10, %c0_11] : memref<1x1x128xf32, #tpu.memory_space<vmem>>, vector<1x1x128xf32>
    tpu.vector_store %arg5[%c0_9, %c0_10, %c0_11], %11 {strides = array<i32>} : memref<1x1x128xf32, #tpu.memory_space<vmem>>, vector<1x1x128xf32>,
    %13 = arith.truncf %3 : vector<328x128xf32> to vector<328x128xbf16>
    %c0_12 = arith.constant 0 : index
    %c0_13 = arith.constant 0 : index
    %c0_14 = arith.constant 0 : index
    %14 = vector.load %arg3[%c0_12, %c0_13, %c0_14] : memref<1x328x128xbf16, #tpu.memory_space<vmem>>, vector<1x328x128xbf16>
    %15 = vector.shape_cast %14 : vector<1x328x128xbf16> to vector<328x128xbf16>
    %16 = vector.shape_cast %13 : vector<328x128xbf16> to vector<1x328x128xbf16>
    tpu.vector_store %arg3[%c0_12, %c0_13, %c0_14], %16 {strides = array<i32>} : memref<1x328x128xbf16, #tpu.memory_space<vmem>>, vector<1x328x128xbf16>,
    return
  }
  func.func @transform_0(%arg0: i32) -> (i32, i32, i32) {
    %c0_i32 = arith.constant 0 : i32
    %c0_i32_0 = arith.constant 0 : i32
    %c0_i32_1 = arith.constant 0 : i32
    return %arg0, %c0_i32, %c0_i32_0 : i32, i32, i32
  }
  func.func @transform_1(%arg0: i32) -> (i32, i32) {
    %c0_i32 = arith.constant 0 : i32
    %c0_i32_0 = arith.constant 0 : i32
    %c0_i32_1 = arith.constant 0 : i32
    return %c0_i32, %c0_i32_0 : i32, i32
  }
  func.func @transform_2(%arg0: i32) -> (i32, i32, i32) {
    %c0_i32 = arith.constant 0 : i32
    %c0_i32_0 = arith.constant 0 : i32
    %c0_i32_1 = arith.constant 0 : i32
    return %arg0, %c0_i32, %c0_i32_0 : i32, i32, i32
  }
  func.func @transform_3(%arg0: i32) -> (i32, i32, i32) {
    %c0_i32 = arith.constant 0 : i32
    %c0_i32_0 = arith.constant 0 : i32
    %c0_i32_1 = arith.constant 0 : i32
    return %arg0, %c0_i32, %c0_i32_0 : i32, i32, i32
  }
  func.func @transform_4(%arg0: i32) -> (i32, i32, i32) {
    %c0_i32 = arith.constant 0 : i32
    %c0_i32_0 = arith.constant 0 : i32
    %c0_i32_1 = arith.constant 0 : i32
    return %arg0, %c0_i32, %c0_i32_0 : i32, i32, i32
  }
}

</mosaic_0001>

<llo_original>
// kernel: tpu_custom_call.1
$region0: #{tpu_custom_call.1}
  #allocation0 [shape = 'u32[]', space=smem, size = 0x4, offset = 0x4, fixed_abs, tag = 'smem constant byte address 0x4 - core index']
  #allocation1 [shape = 'u32[72,128]{1,0:T(1,128)}', space=vmem, size = 0x9000, scoped, tag = 'internal scratch']
  %s0 = inlined_call_operand.hbm [shape: bf16[2,328,128], index: 0, kind: input, shape index: {}]
  %s1 = inlined_call_operand.hbm [shape: bf16[128,128], index: 1, kind: input, shape index: {}]
  %s2 = inlined_call_operand.hbm [shape: bf16[2,328,128], index: 2, kind: output, shape index: {0}]
  %s3 = inlined_call_operand.hbm [shape: f32[2,1,128], index: 3, kind: output, shape index: {1}]
  %s4 = inlined_call_operand.hbm [shape: f32[2,1,128], index: 4, kind: output, shape index: {2}]
  %5 = xla_tuple %s2, %s3, %s4
  %s6 = sld [smem:[#allocation0]]
  $region65: #{tpu_custom_call.1} parent=0
    _
  %s8 = ssub.s32 1, %s6
  %s9 = scalar_select 0, %s8, %s6
  $region1: #{tpu_custom_call.1} parent=0
    #allocation2 [shape = 'u8[167936]{0}', space=vmem, size = 0x29000, scoped, tag = 'input window, operand 0']
    #allocation3 [shape = 's32[2]{0}', space=sflag, size = 0x8, scoped, tag = 'scoped memory for tpu_custom_call.1']
    #allocation4 [shape = 's32[2]{0}', space=sflag, size = 0x8, scoped, tag = 'scoped memory for tpu_custom_call.1']
    #allocation5 [shape = 'u8[32768]{0}', space=vmem, size = 0x8000, scoped, tag = 'input window, operand 1, single buffered']
    #allocation6 [shape = 's32[1]{0}', space=sflag, size = 0x4, scoped, tag = 'scoped memory for tpu_custom_call.1']
    #allocation7 [shape = 'u8[167936]{0}', space=vmem, size = 0x29000, scoped, tag = 'output window, operand 0']
    #allocation8 [shape = 'u8[1024]{0}', space=vmem, size = 0x400, scoped, tag = 'output window, operand 1']
    #allocation9 [shape = 's32[2]{0}', space=sflag, size = 0x8, scoped, tag = 'scoped memory for tpu_custom_call.1']
    #allocation10 [shape = 'u8[1024]{0}', space=vmem, size = 0x400, scoped, tag = 'output window, operand 2']
    %10 = vsyncpa [#allocation3], 0
    %s11 = scalar_lea.sflag [#allocation3], 1
    %12 = vsyncpa %s11, 0
    %13 = vsyncpa [#allocation6], 0
    %14 = vsyncpa [#allocation4], 0
    %s15 = scalar_lea.sflag [#allocation4], 1
    %16 = vsyncpa %s15, 0
    %17 = vsyncpa [#allocation9], 0
    %s18 = scalar_lea.sflag [#allocation9], 1
    %19 = vsyncpa %s18, 0
    loop: start=0, step=1, limit=4
    $region2: #{tpu_custom_call.1} parent=1 // loop_pre_header
      _
    $region3: #{tpu_custom_call.1} parent=1 // loop_header
      %s21 = sphi 0, %s25
      %p22 = scmp.ge.s32.totalorder %s21, 4
      %s31 = sphi 0, %s33
      %s34 = sphi 0, %s31
      %s35 = sphi 0, %s34
      %s51 = sphi 0, %s35
      %s55 = sphi 0, %s55
      %s57 = sphi 0, %s55
      %s58 = sphi 0, %s57
      %s72 = sphi 0, %s58
      %s78 = sphi 0, %s80
      %s81 = sphi 0, %s78
      %s82 = sphi 0, %s81
      %s98 = sphi 0, %s82
      %s104 = sphi 0, %s106
      %s107 = sphi 0, %s104
      %s108 = sphi 0, %s107
      %s124 = sphi 0, %s108
      %s130 = sphi 0, %s132
      %s133 = sphi 0, %s130
      %s134 = sphi 0, %s133
      %s150 = sphi 0, %s134
    $region4: #{tpu_custom_call.1} parent=1 // loop_header_branch
      %24 = sbr.rel (%p22) target = $region8
    $region5: #{tpu_custom_call.1} parent=1 // loop_body
      %s26 = ssub.s32 %s21, 1
      %s27 = ssub.s32 %s21, 2
      %s28 = sadd.s32 %s21, 1
      %s29 = ssub.s32 %s21, %s28
      %p30 = scmp.eq.s32.totalorder %s29, 0
      %s32 = sadd.s32 %s31, 1
      %s33 = scalar_select %p30, %s31, %s32
      %p36 = pneg %p30
      %p37 = scmp.eq.s32.totalorder %s21, 1
      %p38 = por %p36, %p37
      %p39 = scmp.ne.s32.totalorder %s31, %s34
      %p40 = scmp.eq.s32.totalorder %s21, 0
      %p41 = por %p39, %p40
      %p42 = scmp.ne.s32.totalorder %s31, %s34
      %p43 = scmp.eq.s32.totalorder %s26, 1
      %p44 = por %p42, %p43
      %p45 = scmp.ne.s32.totalorder %s34, %s35
      %p46 = scmp.eq.s32.totalorder %s26, 0
      %p47 = por %p45, %p46
      %p48 = scmp.ne.s32.totalorder %s34, %s35
      %p49 = scmp.eq.s32.totalorder %s27, 1
      %p50 = por %p48, %p49
      %p52 = scmp.ne.s32.totalorder %s35, %s51
      %p53 = scmp.eq.s32.totalorder %s27, 0
      %p54 = por %p52, %p53
      %s56 = sadd.s32 %s55, 1
      %p59 = scmp.eq.s32.totalorder %s21, 1
      %p60 = scmp.ne.s32.totalorder %s55, %s57
      %p61 = scmp.eq.s32.totalorder %s21, 0
      %p62 = por %p60, %p61
      %p63 = scmp.ne.s32.totalorder %s55, %s57
      %p64 = scmp.eq.s32.totalorder %s26, 1
      %p65 = por %p63, %p64
      %p66 = scmp.ne.s32.totalorder %s57, %s58
      %p67 = scmp.eq.s32.totalorder %s26, 0
      %p68 = por %p66, %p67
      %p69 = scmp.ne.s32.totalorder %s57, %s58
      %p70 = scmp.eq.s32.totalorder %s27, 1
      %p71 = por %p69, %p70
      %p73 = scmp.ne.s32.totalorder %s58, %s72
      %p74 = scmp.eq.s32.totalorder %s27, 0
      %p75 = por %p73, %p74
      %s76 = ssub.s32 %s21, %s28
      %p77 = scmp.eq.s32.totalorder %s76, 0
      %s79 = sadd.s32 %s78, 1
      %s80 = scalar_select %p77, %s78, %s79
      %p83 = pneg %p77
      %p84 = scmp.eq.s32.totalorder %s21, 1
      %p85 = por %p83, %p84
      %p86 = scmp.ne.s32.totalorder %s78, %s81
      %p87 = scmp.eq.s32.totalorder %s21, 0
      %p88 = por %p86, %p87
      %p89 = scmp.ne.s32.totalorder %s78, %s81
      %p90 = scmp.eq.s32.totalorder %s26, 1
      %p91 = por %p89, %p90
      %p92 = scmp.ne.s32.totalorder %s81, %s82
      %p93 = scmp.eq.s32.totalorder %s26, 0
      %p94 = por %p92, %p93
      %p95 = scmp.ne.s32.totalorder %s81, %s82
      %p96 = scmp.eq.s32.totalorder %s27, 1
      %p97 = por %p95, %p96
      %p99 = scmp.ne.s32.totalorder %s82, %s98
      %p100 = scmp.eq.s32.totalorder %s27, 0
      %p101 = por %p99, %p100
      %s102 = ssub.s32 %s21, %s28
      %p103 = scmp.eq.s32.totalorder %s102, 0
      %s105 = sadd.s32 %s104, 1
      %s106 = scalar_select %p103, %s104, %s105
      %p109 = pneg %p103
      %p110 = scmp.eq.s32.totalorder %s21, 1
      %p111 = por %p109, %p110
      %p112 = scmp.ne.s32.totalorder %s104, %s107
      %p113 = scmp.eq.s32.totalorder %s21, 0
      %p114 = por %p112, %p113
      %p115 = scmp.ne.s32.totalorder %s104, %s107
      %p116 = scmp.eq.s32.totalorder %s26, 1
      %p117 = por %p115, %p116
      %p118 = scmp.ne.s32.totalorder %s107, %s108
      %p119 = scmp.eq.s32.totalorder %s26, 0
      %p120 = por %p118, %p119
      %p121 = scmp.ne.s32.totalorder %s107, %s108
      %p122 = scmp.eq.s32.totalorder %s27, 1
      %p123 = por %p121, %p122
      %p125 = scmp.ne.s32.totalorder %s108, %s124
      %p126 = scmp.eq.s32.totalorder %s27, 0
      %p127 = por %p125, %p126
      %s128 = ssub.s32 %s21, %s28
      %p129 = scmp.eq.s32.totalorder %s128, 0
      %s131 = sadd.s32 %s130, 1
      %s132 = scalar_select %p129, %s130, %s131
      %p135 = pneg %p129
      %p136 = scmp.eq.s32.totalorder %s21, 1
      %p137 = por %p135, %p136
      %p138 = scmp.ne.s32.totalorder %s130, %s133
      %p139 = scmp.eq.s32.totalorder %s21, 0
      %p140 = por %p138, %p139
      %p141 = scmp.ne.s32.totalorder %s130, %s133
      %p142 = scmp.eq.s32.totalorder %s26, 1
      %p143 = por %p141, %p142
      %p144 = scmp.ne.s32.totalorder %s133, %s134
      %p145 = scmp.eq.s32.totalorder %s26, 0
      %p146 = por %p144, %p145
      %p147 = scmp.ne.s32.totalorder %s133, %s134
      %p148 = scmp.eq.s32.totalorder %s27, 1
      %p149 = por %p147, %p148
      %p151 = scmp.ne.s32.totalorder %s134, %s150
      %p152 = scmp.eq.s32.totalorder %s27, 0
      %p153 = por %p151, %p152
      %p154 = scmp.le.s32.totalorder 1, %s21
      %p155 = scmp.lt.s32.totalorder %s21, 3
      %p156 = pnand %p154, %p155
      %p157 = pneg %p156
      // Predicated region
      $region9: #{tpu_custom_call.1} parent=5 // pred_check
        _
      $region10: #{tpu_custom_call.1} parent=5 // pred_check_branch
        %159 = sbr.rel (%p156) target = $region12
      $region11: #{tpu_custom_call.1} parent=5 // pred_region
        %s160 = ssub.s32 %s21, 1
        // Predicated region
        $region13: #{tpu_custom_call.1} parent=11 // pred_check
          %p161 = pneg %p68
        $region14: #{tpu_custom_call.1} parent=11 // pred_check_branch
          %163 = sbr.rel (%p161) target = $region16
        $region15: #{tpu_custom_call.1} parent=11 // pred_region
          %165 = vsyncadd [#allocation6], 0
          %s166 = sshll.u32 %s1, 4
          %s167 = int_to_ptr.hbm [resolvable:$true] %s166
          %s168 = sshll.u32 [#allocation5], 4
          %s169 = int_to_ptr.vmem [resolvable:$true] %s168
          %174 = dma.hbm_to_vmem [thread:$0]  %s167, 1024, %s169, [#allocation6], 64, 64, 4
        $region16: #{tpu_custom_call.1} parent=11 // pred_fallthru
          _
      $region12: #{tpu_custom_call.1} parent=5 // pred_fallthru
        _
      %p175 = scmp.lt.s32.totalorder %s21, 2
      // Predicated region
      $region17: #{tpu_custom_call.1} parent=5 // pred_check
        %p176 = pneg %p175
      $region18: #{tpu_custom_call.1} parent=5 // pred_check_branch
        %178 = sbr.rel (%p176) target = $region20
      $region19: #{tpu_custom_call.1} parent=5 // pred_region
        // Predicated region
        $region21: #{tpu_custom_call.1} parent=19 // pred_check
          %p179 = pneg %p41
        $region22: #{tpu_custom_call.1} parent=19 // pred_check_branch
          %181 = sbr.rel (%p179) target = $region24
        $region23: #{tpu_custom_call.1} parent=19 // pred_region
          %s182 = sand.u32 %s31, 1
          %s183 = scalar_lea.sflag [#allocation3], %s182
          %s184 = sand.u32 %s31, 1
          %s185 = smul.addr %s184, 164
          %s186 = scalar_lea.vmem [#allocation2], %s185
          %188 = vsyncadd %s183, 0
          %s189 = smul.addr %s21, 41
          %s190 = smul.addr %s189, 4
          %s191 = scalar_lea.hbm %s0, %s190
          %s192 = sshll.u32 %s191, 4
          %s193 = int_to_ptr.hbm [resolvable:$true] %s192
          %s194 = sshll.u32 %s186, 4
          %s195 = int_to_ptr.vmem [resolvable:$true] %s194
          %200 = dma.hbm_to_vmem [thread:$0]  %s193, 2624, %s195, %s183, 64, 64, 4
        $region24: #{tpu_custom_call.1} parent=19 // pred_fallthru
          _
      $region20: #{tpu_custom_call.1} parent=5 // pred_fallthru
        _
      %p201 = scmp.le.s32.totalorder 1, %s21
      %p202 = scmp.lt.s32.totalorder %s21, 3
      %p203 = pnand %p201, %p202
      %p204 = pneg %p203
      // Predicated region
      $region25: #{tpu_custom_call.1} parent=5 // pred_check
        _
      $region26: #{tpu_custom_call.1} parent=5 // pred_check_branch
        %206 = sbr.rel (%p203) target = $region28
      $region27: #{tpu_custom_call.1} parent=5 // pred_region
        %s207 = ssub.s32 %s21, 1
        %s208 = sand.u32 %s34, 1
        %s209 = scalar_lea.sflag [#allocation3], %s208
        %s210 = sand.u32 %s34, 1
        %s211 = smul.addr %s210, 164
        %s212 = scalar_lea.vmem [#allocation2], %s211
        // Predicated region
        $region29: #{tpu_custom_call.1} parent=27 // pred_check
          %p213 = pneg %p47
        $region30: #{tpu_custom_call.1} parent=27 // pred_check_branch
          %215 = sbr.rel (%p213) target = $region32
        $region31: #{tpu_custom_call.1} parent=27 // pred_region
          %217 = dma.done %s209, 2624
        $region32: #{tpu_custom_call.1} parent=27 // pred_fallthru
          _
        // Predicated region
        $region33: #{tpu_custom_call.1} parent=27 // pred_check
          %p218 = pneg %p68
        $region34: #{tpu_custom_call.1} parent=27 // pred_check_branch
          %220 = sbr.rel (%p218) target = $region36
        $region35: #{tpu_custom_call.1} parent=27 // pred_region
          %222 = dma.done [#allocation6], 1024
        $region36: #{tpu_custom_call.1} parent=27 // pred_fallthru
          _
        %s223 = sand.u32 %s34, 1
        %s224 = scalar_lea.sflag [#allocation3], %s223
        %s225 = sand.u32 %s34, 1
        %s226 = smul.addr %s225, 164
        %s227 = scalar_lea.vmem [#allocation2], %s226
        %p228 = pneg %p47
        %p229 = pneg %p44
        %p230 = pneg %p68
        %p231 = pneg %p65
        %p232 = pneg %p94
        %p233 = pneg %p91
        %s234 = sand.u32 %s81, 1
        %s235 = scalar_lea.sflag [#allocation4], %s234
        %s236 = sand.u32 %s81, 1
        %s237 = smul.addr %s236, 164
        %s238 = scalar_lea.vmem [#allocation7], %s237
        %p239 = pneg %p120
        %p240 = pneg %p117
        %s241 = sand.u32 %s26, 1
        %s242 = scalar_lea.sflag [#allocation9], %s241
        %s243 = sand.u32 %s107, 1
        %s244 = scalar_lea.vmem [#allocation8], %s243
        %p245 = pneg %p146
        %p246 = pneg %p143
        %s247 = sand.u32 %s26, 1
        %s248 = scalar_lea.sflag [#allocation9], %s247
        %s249 = sand.u32 %s133, 1
        %s250 = scalar_lea.vmem [#allocation10], %s249
        %v251 = vld [vmem:[%s212] sm:$0xf]
        %v252 = vld [vmem:[%s212 + $0x4] sm:$0xf]
        %v253 = vld [vmem:[%s212 + $0x8] sm:$0xf]
        %v254 = vld [vmem:[%s212 + $0xc] sm:$0xf]
        %v255 = vld [vmem:[%s212 + $0x10] sm:$0xf]
        %v256 = vld [vmem:[%s212 + $0x14] sm:$0xf]
        %v257 = vld [vmem:[%s212 + $0x18] sm:$0xf]
        %v258 = vld [vmem:[%s212 + $0x1c] sm:$0xf]
        %v259 = vld [vmem:[%s212 + $0x20] sm:$0xf]
        %v260 = vld [vmem:[%s212 + $0x24] sm:$0xf]
        %v261 = vld [vmem:[%s212 + $0x28] sm:$0xf]
        %v262 = vld [vmem:[%s212 + $0x2c] sm:$0xf]
        %v263 = vld [vmem:[%s212 + $0x30] sm:$0xf]
        %v264 = vld [vmem:[%s212 + $0x34] sm:$0xf]
        %v265 = vld [vmem:[%s212 + $0x38] sm:$0xf]
        %v266 = vld [vmem:[%s212 + $0x3c] sm:$0xf]
        %v267 = vld [vmem:[%s212 + $0x40] sm:$0xf]
        %v268 = vld [vmem:[%s212 + $0x44] sm:$0xf]
        %v269 = vld [vmem:[%s212 + $0x48] sm:$0xf]
        %v270 = vld [vmem:[%s212 + $0x4c] sm:$0xf]
        %v271 = vld [vmem:[%s212 + $0x50] sm:$0xf]
        %v272 = vld [vmem:[%s212 + $0x54] sm:$0xf]
        %v273 = vld [vmem:[%s212 + $0x58] sm:$0xf]
        %v274 = vld [vmem:[%s212 + $0x5c] sm:$0xf]
        %v275 = vld [vmem:[%s212 + $0x60] sm:$0xf]
        %v276 = vld [vmem:[%s212 + $0x64] sm:$0xf]
        %v277 = vld [vmem:[%s212 + $0x68] sm:$0xf]
        %v278 = vld [vmem:[%s212 + $0x6c] sm:$0xf]
        %v279 = vld [vmem:[%s212 + $0x70] sm:$0xf]
        %v280 = vld [vmem:[%s212 + $0x74] sm:$0xf]
        %v281 = vld [vmem:[%s212 + $0x78] sm:$0xf]
        %v282 = vld [vmem:[%s212 + $0x7c] sm:$0xf]
        %v283 = vld [vmem:[%s212 + $0x80] sm:$0xf]
        %v284 = vld [vmem:[%s212 + $0x84] sm:$0xf]
        %v285 = vld [vmem:[%s212 + $0x88] sm:$0xf]
        %v286 = vld [vmem:[%s212 + $0x8c] sm:$0xf]
        %v287 = vld [vmem:[%s212 + $0x90] sm:$0xf]
        %v288 = vld [vmem:[%s212 + $0x94] sm:$0xf]
        %v289 = vld [vmem:[%s212 + $0x98] sm:$0xf]
        %v290 = vld [vmem:[%s212 + $0x9c] sm:$0xf]
        %v291 = vld [vmem:[%s212 + $0xa0] sm:$0xf]
        %v292 = vld [vmem:[#allocation5] sm:$0xf]
        %v293 = vld [vmem:[#allocation5 + $0x4] sm:$0xf]
        %v294 = vld [vmem:[#allocation5 + $0x8] sm:$0xf]
        %v295 = vld [vmem:[#allocation5 + $0xc] sm:$0xf]
        %v296 = vld [vmem:[#allocation5 + $0x10] sm:$0xf]
        %v297 = vld [vmem:[#allocation5 + $0x14] sm:$0xf]
        %v298 = vld [vmem:[#allocation5 + $0x18] sm:$0xf]
        %v299 = vld [vmem:[#allocation5 + $0x1c] sm:$0xf]
        %v300 = vld [vmem:[#allocation5 + $0x20] sm:$0xf]
        %v301 = vld [vmem:[#allocation5 + $0x24] sm:$0xf]
        %v302 = vld [vmem:[#allocation5 + $0x28] sm:$0xf]
        %v303 = vld [vmem:[#allocation5 + $0x2c] sm:$0xf]
        %v304 = vld [vmem:[#allocation5 + $0x30] sm:$0xf]
        %v305 = vld [vmem:[#allocation5 + $0x34] sm:$0xf]
        %v306 = vld [vmem:[#allocation5 + $0x38] sm:$0xf]
        %v307 = vld [vmem:[#allocation5 + $0x3c] sm:$0xf]
        %v349 = vunpack.c.l.b16 %v251
        %v350 = vunpack.c.l.b16 %v252
        %v351 = vunpack.c.l.b16 %v253
        %v352 = vunpack.c.l.b16 %v254
        %v353 = vunpack.c.l.b16 %v255
        %v354 = vunpack.c.l.b16 %v256
        %v355 = vunpack.c.l.b16 %v257
        %v356 = vunpack.c.l.b16 %v258
        %v357 = vunpack.c.l.b16 %v259
        %v358 = vunpack.c.l.b16 %v260
        %v359 = vunpack.c.l.b16 %v261
        %v360 = vunpack.c.l.b16 %v262
        %v361 = vunpack.c.l.b16 %v263
        %v362 = vunpack.c.l.b16 %v264
        %v363 = vunpack.c.l.b16 %v265
        %v364 = vunpack.c.l.b16 %v266
        %v365 = vunpack.c.l.b16 %v267
        %v366 = vunpack.c.l.b16 %v268
        %v367 = vunpack.c.l.b16 %v269
        %v368 = vunpack.c.l.b16 %v270
        %v369 = vunpack.c.l.b16 %v271
        %v370 = vunpack.c.l.b16 %v272
        %v371 = vunpack.c.l.b16 %v273
        %v372 = vunpack.c.l.b16 %v274
        %v373 = vunpack.c.l.b16 %v275
        %v374 = vunpack.c.l.b16 %v276
        %v375 = vunpack.c.l.b16 %v277
        %v376 = vunpack.c.l.b16 %v278
        %v377 = vunpack.c.l.b16 %v279
        %v378 = vunpack.c.l.b16 %v280
        %v379 = vunpack.c.l.b16 %v281
        %v380 = vunpack.c.l.b16 %v282
        %v381 = vunpack.c.l.b16 %v283
        %v382 = vunpack.c.l.b16 %v284
        %v383 = vunpack.c.l.b16 %v285
        %v384 = vunpack.c.l.b16 %v286
        %v385 = vunpack.c.l.b16 %v287
        %v386 = vunpack.c.l.b16 %v288
        %v387 = vunpack.c.l.b16 %v289
        %v388 = vunpack.c.l.b16 %v290
        %v389 = vunpack.c.l.b16 %v291
        %v390 = vpack.c.b16 %v350, %v349
        %v391 = vpack.c.b16 %v352, %v351
        %v392 = vpack.c.b16 %v354, %v353
        %v393 = vpack.c.b16 %v356, %v355
        %v394 = vpack.c.b16 %v358, %v357
        %v395 = vpack.c.b16 %v360, %v359
        %v396 = vpack.c.b16 %v362, %v361
        %v397 = vpack.c.b16 %v364, %v363
        %v398 = vpack.c.b16 %v366, %v365
        %v399 = vpack.c.b16 %v368, %v367
        %v400 = vpack.c.b16 %v370, %v369
        %v401 = vpack.c.b16 %v372, %v371
        %v402 = vpack.c.b16 %v374, %v373
        %v403 = vpack.c.b16 %v376, %v375
        %v404 = vpack.c.b16 %v378, %v377
        %v405 = vpack.c.b16 %v380, %v379
        %v406 = vpack.c.b16 %v382, %v381
        %v407 = vpack.c.b16 %v384, %v383
        %v408 = vpack.c.b16 %v386, %v385
        %v409 = vpack.c.b16 %v388, %v387
        %v410 = vpack.c.b16 %v389, %v389
        %v448 = vunpack.c.l.b16 %v292
        %v449 = vunpack.c.l.b16 %v293
        %v450 = vunpack.c.l.b16 %v294
        %v451 = vunpack.c.l.b16 %v295
        %v452 = vunpack.c.l.b16 %v296
        %v453 = vunpack.c.l.b16 %v297
        %v454 = vunpack.c.l.b16 %v298
        %v455 = vunpack.c.l.b16 %v299
        %v456 = vunpack.c.l.b16 %v300
        %v457 = vunpack.c.l.b16 %v301
        %v458 = vunpack.c.l.b16 %v302
        %v459 = vunpack.c.l.b16 %v303
        %v460 = vunpack.c.l.b16 %v304
        %v461 = vunpack.c.l.b16 %v305
        %v462 = vunpack.c.l.b16 %v306
        %v463 = vunpack.c.l.b16 %v307
        %v464 = vpack.c.b16 %v449, %v448
        %v465 = vpack.c.b16 %v451, %v450
        %v466 = vpack.c.b16 %v453, %v452
        %v467 = vpack.c.b16 %v455, %v454
        %v468 = vpack.c.b16 %v457, %v456
        %v469 = vpack.c.b16 %v459, %v458
        %v470 = vpack.c.b16 %v461, %v460
        %v471 = vpack.c.b16 %v463, %v462
        %480 = vmatpush.bf16.msra.mxu0 %v471
        %481 = vmatpush.bf16.msra.mxu0 %v470
        %482 = vmatpush.bf16.msra.mxu0 %v469
        %483 = vmatpush.bf16.msra.mxu0 %v468
        %484 = vmatpush.bf16.msra.mxu0 %v467
        %485 = vmatpush.bf16.msra.mxu0 %v466
        %486 = vmatpush.bf16.msra.mxu0 %v465
        %487 = vmatpush.bf16.msra.mxu0 %v464
        %488 = vmatmul.bf16.gmra.mxu0 %v390
        %v489 = vpop.f32.mrf.mxu0
        %v490 = vadd.f32 0.0, %v489
        %v491 = vpop.f32.mrf.mxu0
        %v492 = vadd.f32 0.0, %v491
        %493 = vmatmul.bf16.gmra.mxu0 %v391
        %v494 = vpop.f32.mrf.mxu0
        %v495 = vadd.f32 0.0, %v494
        %v496 = vpop.f32.mrf.mxu0
        %v497 = vadd.f32 0.0, %v496
        %498 = vmatmul.bf16.gmra.mxu0 %v392
        %v499 = vpop.f32.mrf.mxu0
        %v500 = vadd.f32 0.0, %v499
        %v501 = vpop.f32.mrf.mxu0
        %v502 = vadd.f32 0.0, %v501
        %503 = vmatmul.bf16.gmra.mxu0 %v393
        %v504 = vpop.f32.mrf.mxu0
        %v505 = vadd.f32 0.0, %v504
        %v506 = vpop.f32.mrf.mxu0
        %v507 = vadd.f32 0.0, %v506
        %508 = vmatmul.bf16.gmra.mxu0 %v394
        %v509 = vpop.f32.mrf.mxu0
        %v510 = vadd.f32 0.0, %v509
        %v511 = vpop.f32.mrf.mxu0
        %v512 = vadd.f32 0.0, %v511
        %513 = vmatmul.bf16.gmra.mxu0 %v395
        %v514 = vpop.f32.mrf.mxu0
        %v515 = vadd.f32 0.0, %v514
        %v516 = vpop.f32.mrf.mxu0
        %v517 = vadd.f32 0.0, %v516
        %518 = vmatmul.bf16.gmra.mxu0 %v396
        %v519 = vpop.f32.mrf.mxu0
        %v520 = vadd.f32 0.0, %v519
        %v521 = vpop.f32.mrf.mxu0
        %v522 = vadd.f32 0.0, %v521
        %523 = vmatmul.bf16.gmra.mxu0 %v397
        %v524 = vpop.f32.mrf.mxu0
        %v525 = vadd.f32 0.0, %v524
        %v526 = vpop.f32.mrf.mxu0
        %v527 = vadd.f32 0.0, %v526
        %528 = vmatmul.bf16.gmra.mxu0 %v398
        %v529 = vpop.f32.mrf.mxu0
        %v530 = vadd.f32 0.0, %v529
        %v531 = vpop.f32.mrf.mxu0
        %v532 = vadd.f32 0.0, %v531
        %533 = vmatmul.bf16.gmra.mxu0 %v399
        %v534 = vpop.f32.mrf.mxu0
        %v535 = vadd.f32 0.0, %v534
        %v536 = vpop.f32.mrf.mxu0
        %v537 = vadd.f32 0.0, %v536
        %538 = vmatmul.bf16.gmra.mxu0 %v400
        %v539 = vpop.f32.mrf.mxu0
        %v540 = vadd.f32 0.0, %v539
        %v541 = vpop.f32.mrf.mxu0
        %v542 = vadd.f32 0.0, %v541
        %543 = vmatmul.bf16.gmra.mxu0 %v401
        %v544 = vpop.f32.mrf.mxu0
        %v545 = vadd.f32 0.0, %v544
        %v546 = vpop.f32.mrf.mxu0
        %v547 = vadd.f32 0.0, %v546
        %548 = vmatmul.bf16.gmra.mxu0 %v402
        %v549 = vpop.f32.mrf.mxu0
        %v550 = vadd.f32 0.0, %v549
        %v551 = vpop.f32.mrf.mxu0
        %v552 = vadd.f32 0.0, %v551
        %553 = vmatmul.bf16.gmra.mxu0 %v403
        %v554 = vpop.f32.mrf.mxu0
        %v555 = vadd.f32 0.0, %v554
        %v556 = vpop.f32.mrf.mxu0
        %v557 = vadd.f32 0.0, %v556
        %558 = vmatmul.bf16.gmra.mxu0 %v404
        %v559 = vpop.f32.mrf.mxu0
        %v560 = vadd.f32 0.0, %v559
        %v561 = vpop.f32.mrf.mxu0
        %v562 = vadd.f32 0.0, %v561
        %563 = vmatmul.bf16.gmra.mxu0 %v405
        %v564 = vpop.f32.mrf.mxu0
        %v565 = vadd.f32 0.0, %v564
        %v566 = vpop.f32.mrf.mxu0
        %v567 = vadd.f32 0.0, %v566
        %568 = vmatmul.bf16.gmra.mxu0 %v406
        %v569 = vpop.f32.mrf.mxu0
        %v570 = vadd.f32 0.0, %v569
        %v571 = vpop.f32.mrf.mxu0
        %v572 = vadd.f32 0.0, %v571
        %573 = vmatmul.bf16.gmra.mxu0 %v407
        %v574 = vpop.f32.mrf.mxu0
        %v575 = vadd.f32 0.0, %v574
        %v576 = vpop.f32.mrf.mxu0
        %v577 = vadd.f32 0.0, %v576
        %578 = vmatmul.bf16.gmra.mxu0 %v408
        %v579 = vpop.f32.mrf.mxu0
        %v580 = vadd.f32 0.0, %v579
        %v581 = vpop.f32.mrf.mxu0
        %v582 = vadd.f32 0.0, %v581
        %583 = vmatmul.bf16.gmra.mxu0 %v409
        %v584 = vpop.f32.mrf.mxu0
        %v585 = vadd.f32 0.0, %v584
        %v586 = vpop.f32.mrf.mxu0
        %v587 = vadd.f32 0.0, %v586
        %588 = vmatmul.bf16.gmra.mxu0 %v410
        %v589 = vpop.f32.mrf.mxu0
        %v590 = vadd.f32 0.0, %v589
        %v591 = vpop.f32.mrf.mxu0
        %592 = vdwg.mxu0
        %v593 = vadd.f32 %v490, %v492
        %v594 = vadd.f32 %v593, %v495
        %v595 = vadd.f32 %v594, %v497
        %v596 = vadd.f32 %v595, %v500
        %v597 = vadd.f32 %v596, %v502
        %v598 = vadd.f32 %v597, %v505
        %v599 = vadd.f32 %v598, %v507
        %v600 = vadd.f32 %v599, %v510
        %v601 = vadd.f32 %v600, %v512
        %v602 = vadd.f32 %v601, %v515
        %v603 = vadd.f32 %v602, %v517
        %v604 = vadd.f32 %v603, %v520
        %v605 = vadd.f32 %v604, %v522
        %v606 = vadd.f32 %v605, %v525
        %v607 = vadd.f32 %v606, %v527
        %v608 = vadd.f32 %v607, %v530
        %v609 = vadd.f32 %v608, %v532
        %v610 = vadd.f32 %v609, %v535
        %v611 = vadd.f32 %v610, %v537
        %v612 = vadd.f32 %v611, %v540
        %v613 = vadd.f32 %v612, %v542
        %v614 = vadd.f32 %v613, %v545
        %v615 = vadd.f32 %v614, %v547
        %v616 = vadd.f32 %v615, %v550
        %v617 = vadd.f32 %v616, %v552
        %v618 = vadd.f32 %v617, %v555
        %v619 = vadd.f32 %v618, %v557
        %v620 = vadd.f32 %v619, %v560
        %v621 = vadd.f32 %v620, %v562
        %v622 = vadd.f32 %v621, %v565
        %v623 = vadd.f32 %v622, %v567
        %v624 = vadd.f32 %v623, %v570
        %v625 = vadd.f32 %v624, %v572
        %v626 = vadd.f32 %v625, %v575
        %v627 = vadd.f32 %v626, %v577
        %v628 = vadd.f32 %v627, %v580
        %v629 = vadd.f32 %v628, %v582
        %v630 = vadd.f32 %v629, %v585
        %v631 = vadd.f32 %v630, %v587
        %v632 = vadd.f32 %v631, %v590
        %v633 = vrot.slane %v632, 4
        %v634 = vadd.f32 %v632, %v633
        %v635 = vrot.slane %v634, 2
        %v636 = vadd.f32 %v634, %v635
        %v637 = vrot.slane %v636, 1
        %v638 = vadd.f32 %v636, %v637
        %639 = vst [vmem:[%s244] sm:$0x1] %v638
        %v640 = vmul.f32 %v490, %v490
        %v641 = vmul.f32 %v492, %v492
        %v642 = vmul.f32 %v495, %v495
        %v643 = vmul.f32 %v497, %v497
        %v644 = vmul.f32 %v500, %v500
        %v645 = vmul.f32 %v502, %v502
        %v646 = vmul.f32 %v505, %v505
        %v647 = vmul.f32 %v507, %v507
        %v648 = vmul.f32 %v510, %v510
        %v649 = vmul.f32 %v512, %v512
        %v650 = vmul.f32 %v515, %v515
        %v651 = vmul.f32 %v517, %v517
        %v652 = vmul.f32 %v520, %v520
        %v653 = vmul.f32 %v522, %v522
        %v654 = vmul.f32 %v525, %v525
        %v655 = vmul.f32 %v527, %v527
        %v656 = vmul.f32 %v530, %v530
        %v657 = vmul.f32 %v532, %v532
        %v658 = vmul.f32 %v535, %v535
        %v659 = vmul.f32 %v537, %v537
        %v660 = vmul.f32 %v540, %v540
        %v661 = vmul.f32 %v542, %v542
        %v662 = vmul.f32 %v545, %v545
        %v663 = vmul.f32 %v547, %v547
        %v664 = vmul.f32 %v550, %v550
        %v665 = vmul.f32 %v552, %v552
        %v666 = vmul.f32 %v555, %v555
        %v667 = vmul.f32 %v557, %v557
        %v668 = vmul.f32 %v560, %v560
        %v669 = vmul.f32 %v562, %v562
        %v670 = vmul.f32 %v565, %v565
        %v671 = vmul.f32 %v567, %v567
        %v672 = vmul.f32 %v570, %v570
        %v673 = vmul.f32 %v572, %v572
        %v674 = vmul.f32 %v575, %v575
        %v675 = vmul.f32 %v577, %v577
        %v676 = vmul.f32 %v580, %v580
        %v677 = vmul.f32 %v582, %v582
        %v678 = vmul.f32 %v585, %v585
        %v679 = vmul.f32 %v587, %v587
        %v680 = vmul.f32 %v590, %v590
        %v681 = vadd.f32 %v640, %v641
        %v682 = vadd.f32 %v681, %v642
        %v683 = vadd.f32 %v682, %v643
        %v684 = vadd.f32 %v683, %v644
        %v685 = vadd.f32 %v684, %v645
        %v686 = vadd.f32 %v685, %v646
        %v687 = vadd.f32 %v686, %v647
        %v688 = vadd.f32 %v687, %v648
        %v689 = vadd.f32 %v688, %v649
        %v690 = vadd.f32 %v689, %v650
        %v691 = vadd.f32 %v690, %v651
        %v692 = vadd.f32 %v691, %v652
        %v693 = vadd.f32 %v692, %v653
        %v694 = vadd.f32 %v693, %v654
        %v695 = vadd.f32 %v694, %v655
        %v696 = vadd.f32 %v695, %v656
        %v697 = vadd.f32 %v696, %v657
        %v698 = vadd.f32 %v697, %v658
        %v699 = vadd.f32 %v698, %v659
        %v700 = vadd.f32 %v699, %v660
        %v701 = vadd.f32 %v700, %v661
        %v702 = vadd.f32 %v701, %v662
        %v703 = vadd.f32 %v702, %v663
        %v704 = vadd.f32 %v703, %v664
        %v705 = vadd.f32 %v704, %v665
        %v706 = vadd.f32 %v705, %v666
        %v707 = vadd.f32 %v706, %v667
        %v708 = vadd.f32 %v707, %v668
        %v709 = vadd.f32 %v708, %v669
        %v710 = vadd.f32 %v709, %v670
        %v711 = vadd.f32 %v710, %v671
        %v712 = vadd.f32 %v711, %v672
        %v713 = vadd.f32 %v712, %v673
        %v714 = vadd.f32 %v713, %v674
        %v715 = vadd.f32 %v714, %v675
        %v716 = vadd.f32 %v715, %v676
        %v717 = vadd.f32 %v716, %v677
        %v718 = vadd.f32 %v717, %v678
        %v719 = vadd.f32 %v718, %v679
        %v720 = vadd.f32 %v719, %v680
        %v721 = vrot.slane %v720, 4
        %v722 = vadd.f32 %v720, %v721
        %v723 = vrot.slane %v722, 2
        %v724 = vadd.f32 %v722, %v723
        %v725 = vrot.slane %v724, 1
        %v726 = vadd.f32 %v724, %v725
        %727 = vst [vmem:[%s250] sm:$0x1] %v726
        %v728 = vpack.c.bf16 %v490, %v490
        %v729 = vpack.c.bf16 %v492, %v492
        %v730 = vpack.c.bf16 %v495, %v495
        %v731 = vpack.c.bf16 %v497, %v497
        %v732 = vpack.c.bf16 %v500, %v500
        %v733 = vpack.c.bf16 %v502, %v502
        %v734 = vpack.c.bf16 %v505, %v505
        %v735 = vpack.c.bf16 %v507, %v507
        %v736 = vpack.c.bf16 %v510, %v510
        %v737 = vpack.c.bf16 %v512, %v512
        %v738 = vpack.c.bf16 %v515, %v515
        %v739 = vpack.c.bf16 %v517, %v517
        %v740 = vpack.c.bf16 %v520, %v520
        %v741 = vpack.c.bf16 %v522, %v522
        %v742 = vpack.c.bf16 %v525, %v525
        %v743 = vpack.c.bf16 %v527, %v527
        %v744 = vpack.c.bf16 %v530, %v530
        %v745 = vpack.c.bf16 %v532, %v532
        %v746 = vpack.c.bf16 %v535, %v535
        %v747 = vpack.c.bf16 %v537, %v537
        %v748 = vpack.c.bf16 %v540, %v540
        %v749 = vpack.c.bf16 %v542, %v542
        %v750 = vpack.c.bf16 %v545, %v545
        %v751 = vpack.c.bf16 %v547, %v547
        %v752 = vpack.c.bf16 %v550, %v550
        %v753 = vpack.c.bf16 %v552, %v552
        %v754 = vpack.c.bf16 %v555, %v555
        %v755 = vpack.c.bf16 %v557, %v557
        %v756 = vpack.c.bf16 %v560, %v560
        %v757 = vpack.c.bf16 %v562, %v562
        %v758 = vpack.c.bf16 %v565, %v565
        %v759 = vpack.c.bf16 %v567, %v567
        %v760 = vpack.c.bf16 %v570, %v570
        %v761 = vpack.c.bf16 %v572, %v572
        %v762 = vpack.c.bf16 %v575, %v575
        %v763 = vpack.c.bf16 %v577, %v577
        %v764 = vpack.c.bf16 %v580, %v580
        %v765 = vpack.c.bf16 %v582, %v582
        %v766 = vpack.c.bf16 %v585, %v585
        %v767 = vpack.c.bf16 %v587, %v587
        %v768 = vpack.c.bf16 %v590, %v590
        %769 = vst [vmem:[%s238] sm:$0xf] %v728
        %770 = vst [vmem:[%s238 + $0x4] sm:$0xf] %v729
        %771 = vst [vmem:[%s238 + $0x8] sm:$0xf] %v730
        %772 = vst [vmem:[%s238 + $0xc] sm:$0xf] %v731
        %773 = vst [vmem:[%s238 + $0x10] sm:$0xf] %v732
        %774 = vst [vmem:[%s238 + $0x14] sm:$0xf] %v733
        %775 = vst [vmem:[%s238 + $0x18] sm:$0xf] %v734
        %776 = vst [vmem:[%s238 + $0x1c] sm:$0xf] %v735
        %777 = vst [vmem:[%s238 + $0x20] sm:$0xf] %v736
        %778 = vst [vmem:[%s238 + $0x24] sm:$0xf] %v737
        %779 = vst [vmem:[%s238 + $0x28] sm:$0xf] %v738
        %780 = vst [vmem:[%s238 + $0x2c] sm:$0xf] %v739
        %781 = vst [vmem:[%s238 + $0x30] sm:$0xf] %v740
        %782 = vst [vmem:[%s238 + $0x34] sm:$0xf] %v741
        %783 = vst [vmem:[%s238 + $0x38] sm:$0xf] %v742
        %784 = vst [vmem:[%s238 + $0x3c] sm:$0xf] %v743
        %785 = vst [vmem:[%s238 + $0x40] sm:$0xf] %v744
        %786 = vst [vmem:[%s238 + $0x44] sm:$0xf] %v745
        %787 = vst [vmem:[%s238 + $0x48] sm:$0xf] %v746
        %788 = vst [vmem:[%s238 + $0x4c] sm:$0xf] %v747
        %789 = vst [vmem:[%s238 + $0x50] sm:$0xf] %v748
        %790 = vst [vmem:[%s238 + $0x54] sm:$0xf] %v749
        %791 = vst [vmem:[%s238 + $0x58] sm:$0xf] %v750
        %792 = vst [vmem:[%s238 + $0x5c] sm:$0xf] %v751
        %793 = vst [vmem:[%s238 + $0x60] sm:$0xf] %v752
        %794 = vst [vmem:[%s238 + $0x64] sm:$0xf] %v753
        %795 = vst [vmem:[%s238 + $0x68] sm:$0xf] %v754
        %796 = vst [vmem:[%s238 + $0x6c] sm:$0xf] %v755
        %797 = vst [vmem:[%s238 + $0x70] sm:$0xf] %v756
        %798 = vst [vmem:[%s238 + $0x74] sm:$0xf] %v757
        %799 = vst [vmem:[%s238 + $0x78] sm:$0xf] %v758
        %800 = vst [vmem:[%s238 + $0x7c] sm:$0xf] %v759
        %801 = vst [vmem:[%s238 + $0x80] sm:$0xf] %v760
        %802 = vst [vmem:[%s238 + $0x84] sm:$0xf] %v761
        %803 = vst [vmem:[%s238 + $0x88] sm:$0xf] %v762
        %804 = vst [vmem:[%s238 + $0x8c] sm:$0xf] %v763
        %805 = vst [vmem:[%s238 + $0x90] sm:$0xf] %v764
        %806 = vst [vmem:[%s238 + $0x94] sm:$0xf] %v765
        %807 = vst [vmem:[%s238 + $0x98] sm:$0xf] %v766
        %808 = vst [vmem:[%s238 + $0x9c] sm:$0xf] %v767
        %809 = vst [vmem:[%s238 + $0xa0] sm:$0xf] %v768
        %s810 = sand.u32 %s81, 1
        %s811 = scalar_lea.sflag [#allocation4], %s810
        %s812 = sand.u32 %s81, 1
        %s813 = smul.addr %s812, 164
        %s814 = scalar_lea.vmem [#allocation7], %s813
        %s815 = sand.u32 %s26, 1
        %s816 = scalar_lea.sflag [#allocation9], %s815
        %s817 = sand.u32 %s107, 1
        %s818 = scalar_lea.vmem [#allocation8], %s817
        %s819 = sand.u32 %s26, 1
        %s820 = scalar_lea.sflag [#allocation9], %s819
        %s821 = sand.u32 %s133, 1
        %s822 = scalar_lea.vmem [#allocation10], %s821
        // Predicated region
        $region37: #{tpu_custom_call.1} parent=27 // pred_check
          %p823 = pneg %p91
        $region38: #{tpu_custom_call.1} parent=27 // pred_check_branch
          %825 = sbr.rel (%p823) target = $region40
        $region39: #{tpu_custom_call.1} parent=27 // pred_region
          %827 = vsyncadd %s811, 0
          %s828 = smul.addr %s26, 41
          %s829 = smul.addr %s828, 4
          %s830 = scalar_lea.hbm %s2, %s829
          %s831 = sshll.u32 %s814, 4
          %s832 = int_to_ptr.vmem [resolvable:$true] %s831
          %s833 = sshll.u32 %s830, 4
          %s834 = int_to_ptr.hbm [resolvable:$true] %s833
          %839 = dma.vmem_to_hbm [thread:$0]  %s832, 2624, %s834, %s811, 64, 64, 4
        $region40: #{tpu_custom_call.1} parent=27 // pred_fallthru
          _
        // Predicated region
        $region41: #{tpu_custom_call.1} parent=27 // pred_check
          %p840 = pneg %p117
        $region42: #{tpu_custom_call.1} parent=27 // pred_check_branch
          %842 = sbr.rel (%p840) target = $region44
        $region43: #{tpu_custom_call.1} parent=27 // pred_region
          %844 = vsyncadd %s816, 0
          %s845 = scalar_lea.hbm %s3, %s26
          %s847 = sshll.u32 %s818, 4
          %s848 = int_to_ptr.vmem [resolvable:$true] %s847
          %s849 = sshll.u32 %s845, 4
          %s850 = int_to_ptr.hbm [resolvable:$true] %s849
          %852 = dma.vmem_to_hbm [thread:$0]  %s848, 16, %s850, %s816
        $region44: #{tpu_custom_call.1} parent=27 // pred_fallthru
          _
        // Predicated region
        $region45: #{tpu_custom_call.1} parent=27 // pred_check
          %p853 = pneg %p143
        $region46: #{tpu_custom_call.1} parent=27 // pred_check_branch
          %855 = sbr.rel (%p853) target = $region48
        $region47: #{tpu_custom_call.1} parent=27 // pred_region
          %857 = vsyncadd %s820, 0
          %s858 = scalar_lea.hbm %s4, %s26
          %s860 = sshll.u32 %s822, 4
          %s861 = int_to_ptr.vmem [resolvable:$true] %s860
          %s862 = sshll.u32 %s858, 4
          %s863 = int_to_ptr.hbm [resolvable:$true] %s862
          %865 = dma.vmem_to_hbm [thread:$0]  %s861, 16, %s863, %s820
        $region48: #{tpu_custom_call.1} parent=27 // pred_fallthru
          _
      $region28: #{tpu_custom_call.1} parent=5 // pred_fallthru
        _
      %p866 = scmp.le.s32.totalorder 2, %s21
      // Predicated region
      $region49: #{tpu_custom_call.1} parent=5 // pred_check
        %p867 = pneg %p866
      $region50: #{tpu_custom_call.1} parent=5 // pred_check_branch
        %869 = sbr.rel (%p867) target = $region52
      $region51: #{tpu_custom_call.1} parent=5 // pred_region
        %s870 = ssub.s32 %s21, 2
        // Predicated region
        $region53: #{tpu_custom_call.1} parent=51 // pred_check
          %p871 = pneg %p97
        $region54: #{tpu_custom_call.1} parent=51 // pred_check_branch
          %873 = sbr.rel (%p871) target = $region56
        $region55: #{tpu_custom_call.1} parent=51 // pred_region
          %s874 = sand.u32 %s82, 1
          %s875 = scalar_lea.sflag [#allocation4], %s874
          %s876 = sand.u32 %s82, 1
          %s877 = smul.addr %s876, 164
          %s878 = scalar_lea.vmem [#allocation7], %s877
          %880 = dma.done %s875, 2624
        $region56: #{tpu_custom_call.1} parent=51 // pred_fallthru
          _
        // Predicated region
        $region57: #{tpu_custom_call.1} parent=51 // pred_check
          %p881 = pneg %p123
        $region58: #{tpu_custom_call.1} parent=51 // pred_check_branch
          %883 = sbr.rel (%p881) target = $region60
        $region59: #{tpu_custom_call.1} parent=51 // pred_region
          %s884 = sand.u32 %s27, 1
          %s885 = scalar_lea.sflag [#allocation9], %s884
          %s886 = sand.u32 %s108, 1
          %s887 = scalar_lea.vmem [#allocation8], %s886
          %889 = dma.done %s885, 16
        $region60: #{tpu_custom_call.1} parent=51 // pred_fallthru
          _
        // Predicated region
        $region61: #{tpu_custom_call.1} parent=51 // pred_check
          %p890 = pneg %p149
        $region62: #{tpu_custom_call.1} parent=51 // pred_check_branch
          %892 = sbr.rel (%p890) target = $region64
        $region63: #{tpu_custom_call.1} parent=51 // pred_region
          %s893 = sand.u32 %s27, 1
          %s894 = scalar_lea.sflag [#allocation9], %s893
          %s895 = sand.u32 %s134, 1
          %s896 = scalar_lea.vmem [#allocation10], %s895
          %898 = dma.done %s894, 16
        $region64: #{tpu_custom_call.1} parent=51 // pred_fallthru
          _
      $region52: #{tpu_custom_call.1} parent=5 // pred_fallthru
        _
    $region6: #{tpu_custom_call.1} parent=1 // loop_footer
      %s25 = sadd.s32 1, %s21
    $region7: #{tpu_custom_call.1} parent=1 // loop_footer_branch
      %20 = sbr.rel target = $region3
    $region8: #{tpu_custom_call.1} parent=1 // loop_exit
      _
    %899 = vsyncpa [#allocation3], 1
    %s900 = scalar_lea.sflag [#allocation3], 1
    %901 = vsyncpa %s900, 1
    %902 = vsyncpa [#allocation6], 1
    %903 = vsyncpa [#allocation4], 1
    %s904 = scalar_lea.sflag [#allocation4], 1
    %905 = vsyncpa %s904, 1
    %906 = vsyncpa [#allocation9], 1
    %s907 = scalar_lea.sflag [#allocation9], 1
    %908 = vsyncpa %s907, 1

</llo_original>
